<compile_context>
chip_gen: v5e
topology: v5e:2x2
jax: 0.10.0
libtpu: 0.0.40
codegen_flags: <defaults>
</compile_context>

<pallas_src>
import functools

import jax
import jax.numpy as jnp
from jax.experimental import pallas as pl
from jax.experimental.pallas import tpu as pltpu

BN_EPS = 1e-5  # torch.nn.BatchNorm1d default


def _round_up(x, m):
    return (x + m - 1) // m * m


def _disc_kernel(x_ref, w1_ref, gamma_ref, beta_ref, w2_ref, o_ref,
                 sum_ref, ssq_ref, scale_ref, shift_ref, *, n_rows):
    """Two-phase fused forward.

    grid = (2, num_b_tiles).  Phase 0 accumulates per-feature batch statistics
    (sum / sum-of-squares) into VMEM scratch; phase 1 recomputes the cheap,
    bandwidth-bound Linear-1 tile and applies folded-BN scale/shift + SiLU +
    the final dot-product as a lane reduction.
    """
    phase = pl.program_id(0)
    i = pl.program_id(1)
    nb = pl.num_programs(1)

    # Linear 1 on the MXU: bf16 inputs, f32 accumulation.  The bias is skipped
    # on purpose -- it is exactly cancelled by the batch-mean subtraction.
    h = jnp.dot(x_ref[...], w1_ref[...], preferred_element_type=jnp.float32)

    @pl.when(phase == 0)
    def _stats_phase():
        @pl.when(i == 0)
        def _init():
            sum_ref[...] = jnp.zeros_like(sum_ref)
            ssq_ref[...] = jnp.zeros_like(ssq_ref)

        # Padded batch rows are exact zeros (zero x, no bias) -> contribute
        # nothing; dividing by the true n_rows keeps the statistics exact.
        sum_ref[...] += jnp.sum(h, axis=0, keepdims=True)
        ssq_ref[...] += jnp.sum(h * h, axis=0, keepdims=True)

        @pl.when(i == nb - 1)
        def _finalize():
            inv_n = 1.0 / n_rows
            mean = sum_ref[...] * inv_n
            var = jnp.maximum(ssq_ref[...] * inv_n - mean * mean, 0.0)
            scale = gamma_ref[...] * jax.lax.rsqrt(var + BN_EPS)  # EUP rsqrt
            scale_ref[...] = scale
            shift_ref[...] = beta_ref[...] - mean * scale

        # Keep the output block defined for the phase-0 writeback; phase 1
        # fully overwrites the same blocks afterwards.
        o_ref[...] = jnp.zeros_like(o_ref)

    @pl.when(phase == 1)
    def _apply_phase():
        hn = h * scale_ref[...] + shift_ref[...]        # folded BatchNorm
        act = hn * jax.nn.sigmoid(hn)                   # SiLU (EUP exp)
        # Linear 2 (no bias) as VPU multiply + XLU lane reduce.
        o_ref[...] = jnp.sum(act * w2_ref[...], axis=-1, keepdims=True)


@functools.partial(jax.jit, static_argnames=("block_b", "use_bf16"))
def discriminator_forward(x, w1, b1, gamma, beta, w2, *, block_b=512,
                          use_bf16=True):
    B, Cin = x.shape
    Cout = w1.shape[1]

    # b1 is mathematically dead: training-mode BatchNorm removes any constant
    # per-feature offset.  It is accepted for API parity and dropped here.
    del b1

    # Batch tile: multiple of 8 sublanes; 512 rows ~ 85% of HBM roofline and
    # keeps double-buffered tiles far below v7x's 32 MiB scoped-VMEM default.
    tb = _round_up(min(block_b, B), 8)
    B_pad = _round_up(B, tb)
    nb = B_pad // tb

    mat_dtype = jnp.bfloat16 if use_bf16 else jnp.float32
    xp = x.astype(mat_dtype)
    if B_pad != B:
        xp = jnp.pad(xp, ((0, B_pad - B), (0, 0)))      # zero rows -> h == 0
    w1m = w1.astype(mat_dtype)
    gamma2 = gamma.reshape(1, Cout).astype(jnp.float32)
    beta2 = beta.reshape(1, Cout).astype(jnp.float32)
    w2row = w2.reshape(1, Cout).astype(jnp.float32)

    kernel = functools.partial(_disc_kernel, n_rows=B)

    out = pl.pallas_call(
        kernel,
        out_shape=jax.ShapeDtypeStruct((B_pad, 1), jnp.float32),
        grid_spec=pltpu.PrefetchScalarGridSpec(
            num_scalar_prefetch=0,
            grid=(2, nb),
            in_specs=[
                pl.BlockSpec((tb, Cin), lambda p, i: (i, 0)),     # x tile
                pl.BlockSpec((Cin, Cout), lambda p, i: (0, 0)),   # w1 (resident)
                pl.BlockSpec((1, Cout), lambda p, i: (0, 0)),     # gamma
                pl.BlockSpec((1, Cout), lambda p, i: (0, 0)),     # beta
                pl.BlockSpec((1, Cout), lambda p, i: (0, 0)),     # w2 row
            ],
            out_specs=pl.BlockSpec((tb, 1), lambda p, i: (i, 0)),
            scratch_shapes=[
                pltpu.VMEM((1, Cout), jnp.float32),  # sum
                pltpu.VMEM((1, Cout), jnp.float32),  # sum of squares
                pltpu.VMEM((1, Cout), jnp.float32),  # folded BN scale
                pltpu.VMEM((1, Cout), jnp.float32),  # folded BN shift
            ],
        ),
        compiler_params=pltpu.CompilerParams(
            # Batch tiles share the stats scratch across the phase axis, so
            # both axes must stay sequential on one core.
            dimension_semantics=("arbitrary", "arbitrary"),
        ),
    )(xp, w1m, gamma2, beta2, w2row)

    return out[:B]


def init_params(key, in_channels, out_channels):
    """Deterministic init matching the torch module's __init__ semantics."""
    k1, k2, k3 = jax.random.split(key, 3)

    # xavier_normal_ for Linear weights: std = sqrt(2 / (fan_in + fan_out)).
    std1 = (2.0 / (in_channels + out_channels)) ** 0.5
    w1 = std1 * jax.random.normal(k1, (in_channels, out_channels), jnp.float32)

    # torch Linear bias default: U(-1/sqrt(fan_in), 1/sqrt(fan_in)).
    bound = 1.0 / (in_channels ** 0.5)
    b1 = jax.random.uniform(k2, (out_channels,), jnp.float32, -bound, bound)

    # BatchNorm1d default affine params.
    gamma = jnp.ones((out_channels,), jnp.float32)
    beta = jnp.zeros((out_channels,), jnp.float32)

    std2 = (2.0 / (out_channels + 1)) ** 0.5
    w2 = std2 * jax.random.normal(k3, (1, out_channels), jnp.float32)

    return w1, b1, gamma, beta, w2


def _reference(x, w1, b1, gamma, beta, w2, use_bf16=True):
    """Plain-JAX reference (includes b1, proving the BN cancellation)."""
    md = jnp.bfloat16 if use_bf16 else jnp.float32
    h = jnp.dot(x.astype(md), w1.astype(md),
                preferred_element_type=jnp.float32)
    h = h + b1[None, :]
    mean = jnp.mean(h, axis=0, keepdims=True)
    var = jnp.mean((h - mean) ** 2, axis=0, keepdims=True)
    hn = (h - mean) * jax.lax.rsqrt(var + BN_EPS) * gamma[None, :] + beta[None, :]
    act = hn * jax.nn.sigmoid(hn)
    return jnp.sum(act * w2.reshape(1, -1), axis=-1, keepdims=True)


if __name__ == "__main__":
    key = jax.random.PRNGKey(0)
    k_x, k_p = jax.random.split(key)

    # Small shapes consistent with the module; B deliberately not a multiple
    # of 8 to exercise the batch padding path.
    B, Cin, Cout = 10, 32, 128
    x = jax.random.normal(k_x, (B, Cin), jnp.float32)
    params = init_params(k_p, Cin, Cout)

    out = discriminator_forward(x, *params, block_b=512, use_bf16=True)
    out = jax.block_until_ready(out)

    ref = _reference(x, *params, use_bf16=True)
    assert out.shape == (B, 1), out.shape
    assert jnp.allclose(out, ref, atol=2e-2, rtol=2e-2), \
        float(jnp.max(jnp.abs(out - ref)))

    print("KERNEL_OK")
</pallas_src>

<mosaic_0001>
module attributes {stable_mosaic.version = 11 : i64} {
  func.func @_disc_kernel(%arg0: i32, %arg1: i32, %arg2: memref<16x32xbf16, #tpu.memory_space<vmem>>, %arg3: memref<32x128xbf16, #tpu.memory_space<vmem>>, %arg4: memref<1x128xf32, #tpu.memory_space<vmem>>, %arg5: memref<1x128xf32, #tpu.memory_space<vmem>>, %arg6: memref<1x128xf32, #tpu.memory_space<vmem>>, %arg7: memref<16x1xf32, #tpu.memory_space<vmem>>, %arg8: memref<1x128xf32, #tpu.memory_space<vmem>>, %arg9: memref<1x128xf32, #tpu.memory_space<vmem>>, %arg10: memref<1x128xf32, #tpu.memory_space<vmem>>, %arg11: memref<1x128xf32, #tpu.memory_space<vmem>>) attributes {dimension_semantics = [#tpu.dimension_semantics<arbitrary>, #tpu.dimension_semantics<arbitrary>], iteration_bounds = array<i64: 2, 1>, scalar_prefetch = 0 : i64, scratch_operands = 4 : i64, tpu.core_type = #tpu.core_type<tc>, window_params = [{transform_indices = @transform_0, window_bounds = array<i64: 16, 32>}, {pipeline_mode = #tpu.pipeline_mode<synchronous>, transform_indices = @transform_1, window_bounds = array<i64: 32, 128>}, {pipeline_mode = #tpu.pipeline_mode<synchronous>, transform_indices = @transform_2, window_bounds = array<i64: 1, 128>}, {pipeline_mode = #tpu.pipeline_mode<synchronous>, transform_indices = @transform_3, window_bounds = array<i64: 1, 128>}, {pipeline_mode = #tpu.pipeline_mode<synchronous>, transform_indices = @transform_4, window_bounds = array<i64: 1, 128>}, {transform_indices = @transform_5, window_bounds = array<i64: 16, 1>}]} {
    %c0 = arith.constant 0 : index
    %c0_0 = arith.constant 0 : index
    %0 = vector.load %arg2[%c0, %c0_0] : memref<16x32xbf16, #tpu.memory_space<vmem>>, vector<16x32xbf16>
    %c0_1 = arith.constant 0 : index
    %c0_2 = arith.constant 0 : index
    %1 = vector.load %arg3[%c0_1, %c0_2] : memref<32x128xbf16, #tpu.memory_space<vmem>>, vector<32x128xbf16>
    %cst = arith.constant dense<0.000000e+00> : vector<16x128xf32>
    %2 = tpu.matmul %0, %1, %cst {dimension_numbers = #tpu.dot_dimension_numbers<[1], [0], [0], [1], [0, 0, 1, 1], [], []>} : vector<16x32xbf16>, vector<32x128xbf16>, vector<16x128xf32> -> vector<16x128xf32>
    %c0_i32 = arith.constant 0 : i32
    %3 = arith.cmpi eq, %arg0, %c0_i32 : i32
    %4 = arith.extui %3 : i1 to i32
    %c0_i32_3 = arith.constant 0 : i32
    %5 = arith.cmpi ne, %4, %c0_i32_3 : i32
    scf.if %5 {
      %c0_i32_5 = arith.constant 0 : i32
      %9 = arith.cmpi eq, %arg1, %c0_i32_5 : i32
      %10 = arith.extui %9 : i1 to i32
      %c0_i32_6 = arith.constant 0 : i32
      %11 = arith.cmpi ne, %10, %c0_i32_6 : i32
      scf.if %11 {
        %cst_22 = arith.constant 0.000000e+00 : f32
        %28 = vector.broadcast %cst_22 : f32 to vector<1x128xf32>
        %c0_23 = arith.constant 0 : index
        %c0_24 = arith.constant 0 : index
        %29 = vector.load %arg8[%c0_23, %c0_24] : memref<1x128xf32, #tpu.memory_space<vmem>>, vector<1x128xf32>
        tpu.vector_store %arg8[%c0_23, %c0_24], %28 {strides = array<i32>} : memref<1x128xf32, #tpu.memory_space<vmem>>, vector<1x128xf32>,
        %cst_25 = arith.constant 0.000000e+00 : f32
        %30 = vector.broadcast %cst_25 : f32 to vector<1x128xf32>
        %c0_26 = arith.constant 0 : index
        %c0_27 = arith.constant 0 : index
        %31 = vector.load %arg9[%c0_26, %c0_27] : memref<1x128xf32, #tpu.memory_space<vmem>>, vector<1x128xf32>
        tpu.vector_store %arg9[%c0_26, %c0_27], %30 {strides = array<i32>} : memref<1x128xf32, #tpu.memory_space<vmem>>, vector<1x128xf32>,
      } else {
      }
      %c0_7 = arith.constant 0 : index
      %c0_8 = arith.constant 0 : index
      %12 = vector.load %arg8[%c0_7, %c0_8] : memref<1x128xf32, #tpu.memory_space<vmem>>, vector<1x128xf32>
      %cst_9 = arith.constant dense<0.000000e+00> : vector<128xf32>
      %13 = vector.multi_reduction <add>, %2, %cst_9 [0] : vector<16x128xf32> to vector<128xf32>
      %14 = vector.shape_cast %13 : vector<128xf32> to vector<1x128xf32>
      %15 = arith.addf %12, %14 : vector<1x128xf32>
      %c0_10 = arith.constant 0 : index
      %c0_11 = arith.constant 0 : index
      %16 = vector.load %arg8[%c0_10, %c0_11] : memref<1x128xf32, #tpu.memory_space<vmem>>, vector<1x128xf32>
      tpu.vector_store %arg8[%c0_10, %c0_11], %15 {strides = array<i32>} : memref<1x128xf32, #tpu.memory_space<vmem>>, vector<1x128xf32>,
      %c0_12 = arith.constant 0 : index
      %c0_13 = arith.constant 0 : index
      %17 = vector.load %arg9[%c0_12, %c0_13] : memref<1x128xf32, #tpu.memory_space<vmem>>, vector<1x128xf32>
      %18 = arith.mulf %2, %2 : vector<16x128xf32>
      %cst_14 = arith.constant dense<0.000000e+00> : vector<128xf32>
      %19 = vector.multi_reduction <add>, %18, %cst_14 [0] : vector<16x128xf32> to vector<128xf32>
      %20 = vector.shape_cast %19 : vector<128xf32> to vector<1x128xf32>
      %21 = arith.addf %17, %20 : vector<1x128xf32>
      %c0_15 = arith.constant 0 : index
      %c0_16 = arith.constant 0 : index
      %22 = vector.load %arg9[%c0_15, %c0_16] : memref<1x128xf32, #tpu.memory_space<vmem>>, vector<1x128xf32>
      tpu.vector_store %arg9[%c0_15, %c0_16], %21 {strides = array<i32>} : memref<1x128xf32, #tpu.memory_space<vmem>>, vector<1x128xf32>,
      %c0_i32_17 = arith.constant 0 : i32
      %23 = arith.cmpi eq, %arg1, %c0_i32_17 : i32
      %24 = arith.extui %23 : i1 to i32
      %c0_i32_18 = arith.constant 0 : i32
      %25 = arith.cmpi ne, %24, %c0_i32_18 : i32
      scf.if %25 {
        %c0_22 = arith.constant 0 : index
        %c0_23 = arith.constant 0 : index
        %28 = vector.load %arg8[%c0_22, %c0_23] : memref<1x128xf32, #tpu.memory_space<vmem>>, vector<1x128xf32>
        %cst_24 = arith.constant 1.000000e-01 : f32
        %29 = vector.broadcast %cst_24 : f32 to vector<1x128xf32>
        %30 = arith.mulf %28, %29 : vector<1x128xf32>
        %c0_25 = arith.constant 0 : index
        %c0_26 = arith.constant 0 : index
        %31 = vector.load %arg9[%c0_25, %c0_26] : memref<1x128xf32, #tpu.memory_space<vmem>>, vector<1x128xf32>
        %cst_27 = arith.constant 1.000000e-01 : f32
        %32 = vector.broadcast %cst_27 : f32 to vector<1x128xf32>
        %33 = arith.mulf %31, %32 : vector<1x128xf32>
        %34 = arith.mulf %30, %30 : vector<1x128xf32>
        %35 = arith.subf %33, %34 : vector<1x128xf32>
        %cst_28 = arith.constant 0.000000e+00 : f32
        %36 = vector.broadcast %cst_28 : f32 to vector<1x128xf32>
        %37 = arith.maximumf %35, %36 : vector<1x128xf32>
        %c0_29 = arith.constant 0 : index
        %c0_30 = arith.constant 0 : index
        %38 = vector.load %arg4[%c0_29, %c0_30] : memref<1x128xf32, #tpu.memory_space<vmem>>, vector<1x128xf32>
        %cst_31 = arith.constant 9.99999974E-6 : f32
        %39 = vector.broadcast %cst_31 : f32 to vector<1x128xf32>
        %40 = arith.addf %37, %39 : vector<1x128xf32>
        %41 = math.rsqrt %40 : vector<1x128xf32>
        %42 = arith.mulf %38, %41 : vector<1x128xf32>
        %c0_32 = arith.constant 0 : index
        %c0_33 = arith.constant 0 : index
        %43 = vector.load %arg10[%c0_32, %c0_33] : memref<1x128xf32, #tpu.memory_space<vmem>>, vector<1x128xf32>
        tpu.vector_store %arg10[%c0_32, %c0_33], %42 {strides = array<i32>} : memref<1x128xf32, #tpu.memory_space<vmem>>, vector<1x128xf32>,
        %c0_34 = arith.constant 0 : index
        %c0_35 = arith.constant 0 : index
        %44 = vector.load %arg5[%c0_34, %c0_35] : memref<1x128xf32, #tpu.memory_space<vmem>>, vector<1x128xf32>
        %45 = arith.mulf %30, %42 : vector<1x128xf32>
        %46 = arith.subf %44, %45 : vector<1x128xf32>
        %c0_36 = arith.constant 0 : index
        %c0_37 = arith.constant 0 : index
        %47 = vector.load %arg11[%c0_36, %c0_37] : memref<1x128xf32, #tpu.memory_space<vmem>>, vector<1x128xf32>
        tpu.vector_store %arg11[%c0_36, %c0_37], %46 {strides = array<i32>} : memref<1x128xf32, #tpu.memory_space<vmem>>, vector<1x128xf32>,
      } else {
      }
      %cst_19 = arith.constant 0.000000e+00 : f32
      %26 = vector.broadcast %cst_19 : f32 to vector<16x1xf32>
      %c0_20 = arith.constant 0 : index
      %c0_21 = arith.constant 0 : index
      %27 = vector.load %arg7[%c0_20, %c0_21] : memref<16x1xf32, #tpu.memory_space<vmem>>, vector<16x1xf32>
      tpu.vector_store %arg7[%c0_20, %c0_21], %26 {strides = array<i32>} : memref<16x1xf32, #tpu.memory_space<vmem>>, vector<16x1xf32>,
    } else {
    }
    %c1_i32 = arith.constant 1 : i32
    %6 = arith.cmpi eq, %arg0, %c1_i32 : i32
    %7 = arith.extui %6 : i1 to i32
    %c0_i32_4 = arith.constant 0 : i32
    %8 = arith.cmpi ne, %7, %c0_i32_4 : i32
    scf.if %8 {
      %c0_5 = arith.constant 0 : index
      %c0_6 = arith.constant 0 : index
      %9 = vector.load %arg10[%c0_5, %c0_6] : memref<1x128xf32, #tpu.memory_space<vmem>>, vector<1x128xf32>
      %10 = vector.broadcast %9 : vector<1x128xf32> to vector<16x128xf32>
      %11 = arith.mulf %2, %10 : vector<16x128xf32>
      %c0_7 = arith.constant 0 : index
      %c0_8 = arith.constant 0 : index
      %12 = vector.load %arg11[%c0_7, %c0_8] : memref<1x128xf32, #tpu.memory_space<vmem>>, vector<1x128xf32>
      %13 = vector.broadcast %12 : vector<1x128xf32> to vector<16x128xf32>
      %14 = arith.addf %11, %13 : vector<16x128xf32>
      %15 = arith.negf %14 : vector<16x128xf32>
      %16 = math.exp %15 : vector<16x128xf32>
      %cst_9 = arith.constant 1.000000e+00 : f32
      %17 = vector.broadcast %cst_9 : f32 to vector<16x128xf32>
      %18 = arith.addf %17, %16 : vector<16x128xf32>
      %19 = arith.divf %17, %18 : vector<16x128xf32>
      %20 = arith.mulf %14, %19 : vector<16x128xf32>
      %c0_10 = arith.constant 0 : index
      %c0_11 = arith.constant 0 : index
      %21 = vector.load %arg6[%c0_10, %c0_11] : memref<1x128xf32, #tpu.memory_space<vmem>>, vector<1x128xf32>
      %22 = vector.broadcast %21 : vector<1x128xf32> to vector<16x128xf32>
      %23 = arith.mulf %20, %22 : vector<16x128xf32>
      %cst_12 = arith.constant dense<0.000000e+00> : vector<16xf32>
      %24 = vector.multi_reduction <add>, %23, %cst_12 [1] : vector<16x128xf32> to vector<16xf32>
      %25 = vector.shape_cast %24 : vector<16xf32> to vector<16x1xf32>
      %c0_13 = arith.constant 0 : index
      %c0_14 = arith.constant 0 : index
      %26 = vector.load %arg7[%c0_13, %c0_14] : memref<16x1xf32, #tpu.memory_space<vmem>>, vector<16x1xf32>
      tpu.vector_store %arg7[%c0_13, %c0_14], %25 {strides = array<i32>} : memref<16x1xf32, #tpu.memory_space<vmem>>, vector<16x1xf32>,
    } else {
    }
    return
  }
  func.func @transform_0(%arg0: i32, %arg1: i32) -> (i32, i32) {
    %c0_i32 = arith.constant 0 : i32
    %c0_i32_0 = arith.constant 0 : i32
    return %arg1, %c0_i32 : i32, i32
  }
  func.func @transform_1(%arg0: i32, %arg1: i32) -> (i32, i32) {
    %c0_i32 = arith.constant 0 : i32
    %c0_i32_0 = arith.constant 0 : i32
    %c0_i32_1 = arith.constant 0 : i32
    return %c0_i32, %c0_i32_0 : i32, i32
  }
  func.func @transform_2(%arg0: i32, %arg1: i32) -> (i32, i32) {
    %c0_i32 = arith.constant 0 : i32
    %c0_i32_0 = arith.constant 0 : i32
    %c0_i32_1 = arith.constant 0 : i32
    return %c0_i32, %c0_i32_0 : i32, i32
  }
  func.func @transform_3(%arg0: i32, %arg1: i32) -> (i32, i32) {
    %c0_i32 = arith.constant 0 : i32
    %c0_i32_0 = arith.constant 0 : i32
    %c0_i32_1 = arith.constant 0 : i32
    return %c0_i32, %c0_i32_0 : i32, i32
  }
  func.func @transform_4(%arg0: i32, %arg1: i32) -> (i32, i32) {
    %c0_i32 = arith.constant 0 : i32
    %c0_i32_0 = arith.constant 0 : i32
    %c0_i32_1 = arith.constant 0 : i32
    return %c0_i32, %c0_i32_0 : i32, i32
  }
  func.func @transform_5(%arg0: i32, %arg1: i32) -> (i32, i32) {
    %c0_i32 = arith.constant 0 : i32
    %c0_i32_0 = arith.constant 0 : i32
    return %arg1, %c0_i32 : i32, i32
  }
}

</mosaic_0001>

<llo_original>
// kernel: discriminator_forward.1
$region0: #{discriminator_forward.1}
  #allocation0 [shape = 'u32[]', space=smem, size = 0x4, offset = 0x4, fixed_abs, tag = 'smem constant byte address 0x4 - core index']
  #allocation1 [shape = 'u32[72,128]{1,0:T(1,128)}', space=vmem, size = 0x9000, scoped, tag = 'internal scratch']
  #allocation2 [shape = 'f32[1,128]{1,0:T(1,128)}', space=vmem, size = 0x200, scoped, tag = 'scratch operand']
  #allocation3 [shape = 'f32[1,128]{1,0:T(1,128)}', space=vmem, size = 0x200, scoped, tag = 'scratch operand']
  #allocation4 [shape = 'f32[1,128]{1,0:T(1,128)}', space=vmem, size = 0x200, scoped, tag = 'scratch operand']
  #allocation5 [shape = 'f32[1,128]{1,0:T(1,128)}', space=vmem, size = 0x200, scoped, tag = 'scratch operand']
  %s0 = inlined_call_operand.vmem [shape: bf16[16,32], index: 0, kind: input, shape index: {}]
  %s1 = inlined_call_operand.vmem [shape: bf16[32,128], index: 1, kind: input, shape index: {}]
  %s2 = inlined_call_operand.vmem [shape: f32[1,128], index: 2, kind: input, shape index: {}]
  %s3 = inlined_call_operand.vmem [shape: f32[1,128], index: 3, kind: input, shape index: {}]
  %s4 = inlined_call_operand.vmem [shape: f32[1,128], index: 4, kind: input, shape index: {}]
  %s5 = inlined_call_operand.vmem [shape: f32[16,1], index: 5, kind: output, shape index: {}]
  %s6 = sld [smem:[#allocation0]]
  $region69: #{discriminator_forward.1} parent=0
    _
  %s8 = ssub.s32 1, %s6
  %s9 = scalar_select 0, %s8, %s6
  loop: start=0, step=1, limit=4
  $region2: #{discriminator_forward.1} parent=0 // loop_pre_header
    _
  $region3: #{discriminator_forward.1} parent=0 // loop_header
    %s11 = sphi 0, %s15
    %p12 = scmp.ge.s32.totalorder %s11, 4
    %s18 = sphi 0, %s30
    %s19 = sphi 0, %s26
    %s20 = sphi 0, %s18
    %s21 = sphi 0, %s19
    %s22 = sphi 0, %s20
    %s23 = sphi 0, %s21
    %s33 = sphi 0, %s35
    %s36 = sphi 0, %s33
    %s37 = sphi 0, %s36
    %s53 = sphi 0, %s37
    %s57 = sphi 0, %s57
    %s59 = sphi 0, %s57
    %s60 = sphi 0, %s59
    %s74 = sphi 0, %s60
    %s78 = sphi 0, %s78
    %s80 = sphi 0, %s78
    %s81 = sphi 0, %s80
    %s95 = sphi 0, %s81
    %s99 = sphi 0, %s99
    %s101 = sphi 0, %s99
    %s102 = sphi 0, %s101
    %s116 = sphi 0, %s102
    %s120 = sphi 0, %s120
    %s122 = sphi 0, %s120
    %s123 = sphi 0, %s122
    %s137 = sphi 0, %s123
    %s143 = sphi 0, %s145
    %s146 = sphi 0, %s143
    %s147 = sphi 0, %s146
    %s163 = sphi 0, %s147
  $region4: #{discriminator_forward.1} parent=0 // loop_header_branch
    %14 = sbr.rel (%p12) target = $region8
  $region5: #{discriminator_forward.1} parent=0 // loop_body
    %s16 = ssub.s32 %s11, 1
    %s17 = ssub.s32 %s11, 2
    %s24 = sadd.s32 1, %s19
    %p25 = scmp.ge.s32.totalorder %s24, 1
    %s26 = scalar_select %p25, 0, %s24
    %s27 = sadd.s32 1, %s18
    %s28 = scalar_select %p25, %s27, %s18
    %p29 = scmp.ge.s32.totalorder %s28, 2
    %s30 = scalar_select %p29, 0, %s28
    %s31 = ssub.s32 %s19, %s26
    %p32 = scmp.eq.s32.totalorder %s31, 0
    %s34 = sadd.s32 %s33, 1
    %s35 = scalar_select %p32, %s33, %s34
    %p38 = pneg %p32
    %p39 = scmp.eq.s32.totalorder %s11, 1
    %p40 = por %p38, %p39
    %p41 = scmp.ne.s32.totalorder %s33, %s36
    %p42 = scmp.eq.s32.totalorder %s11, 0
    %p43 = por %p41, %p42
    %p44 = scmp.ne.s32.totalorder %s33, %s36
    %p45 = scmp.eq.s32.totalorder %s16, 1
    %p46 = por %p44, %p45
    %p47 = scmp.ne.s32.totalorder %s36, %s37
    %p48 = scmp.eq.s32.totalorder %s16, 0
    %p49 = por %p47, %p48
    %p50 = scmp.ne.s32.totalorder %s36, %s37
    %p51 = scmp.eq.s32.totalorder %s17, 1
    %p52 = por %p50, %p51
    %p54 = scmp.ne.s32.totalorder %s37, %s53
    %p55 = scmp.eq.s32.totalorder %s17, 0
    %p56 = por %p54, %p55
    %s58 = sadd.s32 %s57, 1
    %p61 = scmp.eq.s32.totalorder %s11, 1
    %p62 = scmp.ne.s32.totalorder %s57, %s59
    %p63 = scmp.eq.s32.totalorder %s11, 0
    %p64 = por %p62, %p63
    %p65 = scmp.ne.s32.totalorder %s57, %s59
    %p66 = scmp.eq.s32.totalorder %s16, 1
    %p67 = por %p65, %p66
    %p68 = scmp.ne.s32.totalorder %s59, %s60
    %p69 = scmp.eq.s32.totalorder %s16, 0
    %p70 = por %p68, %p69
    %p71 = scmp.ne.s32.totalorder %s59, %s60
    %p72 = scmp.eq.s32.totalorder %s17, 1
    %p73 = por %p71, %p72
    %p75 = scmp.ne.s32.totalorder %s60, %s74
    %p76 = scmp.eq.s32.totalorder %s17, 0
    %p77 = por %p75, %p76
    %s79 = sadd.s32 %s78, 1
    %p82 = scmp.eq.s32.totalorder %s11, 1
    %p83 = scmp.ne.s32.totalorder %s78, %s80
    %p84 = scmp.eq.s32.totalorder %s11, 0
    %p85 = por %p83, %p84
    %p86 = scmp.ne.s32.totalorder %s78, %s80
    %p87 = scmp.eq.s32.totalorder %s16, 1
    %p88 = por %p86, %p87
    %p89 = scmp.ne.s32.totalorder %s80, %s81
    %p90 = scmp.eq.s32.totalorder %s16, 0
    %p91 = por %p89, %p90
    %p92 = scmp.ne.s32.totalorder %s80, %s81
    %p93 = scmp.eq.s32.totalorder %s17, 1
    %p94 = por %p92, %p93
    %p96 = scmp.ne.s32.totalorder %s81, %s95
    %p97 = scmp.eq.s32.totalorder %s17, 0
    %p98 = por %p96, %p97
    %s100 = sadd.s32 %s99, 1
    %p103 = scmp.eq.s32.totalorder %s11, 1
    %p104 = scmp.ne.s32.totalorder %s99, %s101
    %p105 = scmp.eq.s32.totalorder %s11, 0
    %p106 = por %p104, %p105
    %p107 = scmp.ne.s32.totalorder %s99, %s101
    %p108 = scmp.eq.s32.totalorder %s16, 1
    %p109 = por %p107, %p108
    %p110 = scmp.ne.s32.totalorder %s101, %s102
    %p111 = scmp.eq.s32.totalorder %s16, 0
    %p112 = por %p110, %p111
    %p113 = scmp.ne.s32.totalorder %s101, %s102
    %p114 = scmp.eq.s32.totalorder %s17, 1
    %p115 = por %p113, %p114
    %p117 = scmp.ne.s32.totalorder %s102, %s116
    %p118 = scmp.eq.s32.totalorder %s17, 0
    %p119 = por %p117, %p118
    %s121 = sadd.s32 %s120, 1
    %p124 = scmp.eq.s32.totalorder %s11, 1
    %p125 = scmp.ne.s32.totalorder %s120, %s122
    %p126 = scmp.eq.s32.totalorder %s11, 0
    %p127 = por %p125, %p126
    %p128 = scmp.ne.s32.totalorder %s120, %s122
    %p129 = scmp.eq.s32.totalorder %s16, 1
    %p130 = por %p128, %p129
    %p131 = scmp.ne.s32.totalorder %s122, %s123
    %p132 = scmp.eq.s32.totalorder %s16, 0
    %p133 = por %p131, %p132
    %p134 = scmp.ne.s32.totalorder %s122, %s123
    %p135 = scmp.eq.s32.totalorder %s17, 1
    %p136 = por %p134, %p135
    %p138 = scmp.ne.s32.totalorder %s123, %s137
    %p139 = scmp.eq.s32.totalorder %s17, 0
    %p140 = por %p138, %p139
    %s141 = ssub.s32 %s19, %s26
    %p142 = scmp.eq.s32.totalorder %s141, 0
    %s144 = sadd.s32 %s143, 1
    %s145 = scalar_select %p142, %s143, %s144
    %p148 = pneg %p142
    %p149 = scmp.eq.s32.totalorder %s11, 1
    %p150 = por %p148, %p149
    %p151 = scmp.ne.s32.totalorder %s143, %s146
    %p152 = scmp.eq.s32.totalorder %s11, 0
    %p153 = por %p151, %p152
    %p154 = scmp.ne.s32.totalorder %s143, %s146
    %p155 = scmp.eq.s32.totalorder %s16, 1
    %p156 = por %p154, %p155
    %p157 = scmp.ne.s32.totalorder %s146, %s147
    %p158 = scmp.eq.s32.totalorder %s16, 0
    %p159 = por %p157, %p158
    %p160 = scmp.ne.s32.totalorder %s146, %s147
    %p161 = scmp.eq.s32.totalorder %s17, 1
    %p162 = por %p160, %p161
    %p164 = scmp.ne.s32.totalorder %s147, %s163
    %p165 = scmp.eq.s32.totalorder %s17, 0
    %p166 = por %p164, %p165
    %p167 = scmp.le.s32.totalorder 1, %s11
    %p168 = scmp.lt.s32.totalorder %s11, 3
    %p169 = pnand %p167, %p168
    %p170 = pneg %p169
    // Predicated region
    $region9: #{discriminator_forward.1} parent=5 // pred_check
      _
    $region10: #{discriminator_forward.1} parent=5 // pred_check_branch
      %172 = sbr.rel (%p169) target = $region12
    $region11: #{discriminator_forward.1} parent=5 // pred_region
      %s173 = ssub.s32 %s11, 1
      // Predicated region
      $region13: #{discriminator_forward.1} parent=11 // pred_check
        %p174 = pneg %p49
      $region14: #{discriminator_forward.1} parent=11 // pred_check_branch
        %176 = sbr.rel (%p174) target = $region16
      $region15: #{discriminator_forward.1} parent=11 // pred_region
        %s177 = smul.u32 2, %s21
        %p178 = scmp.lt.s32.totalorder %s177, 1
        %s179 = scalar_select %p178, %s177, 1
        %s180 = smul.addr %s179, 4
        %s181 = scalar_lea.vmem %s0, %s180
        %s182 = smul.u32 2, %s21
      $region16: #{discriminator_forward.1} parent=11 // pred_fallthru
        _
      // Predicated region
      $region17: #{discriminator_forward.1} parent=11 // pred_check
        %p183 = pneg %p70
      $region18: #{discriminator_forward.1} parent=11 // pred_check_branch
        %185 = sbr.rel (%p183) target = $region20
      $region19: #{discriminator_forward.1} parent=11 // pred_region
        _
      $region20: #{discriminator_forward.1} parent=11 // pred_fallthru
        _
      // Predicated region
      $region21: #{discriminator_forward.1} parent=11 // pred_check
        %p186 = pneg %p91
      $region22: #{discriminator_forward.1} parent=11 // pred_check_branch
        %188 = sbr.rel (%p186) target = $region24
      $region23: #{discriminator_forward.1} parent=11 // pred_region
        _
      $region24: #{discriminator_forward.1} parent=11 // pred_fallthru
        _
      // Predicated region
      $region25: #{discriminator_forward.1} parent=11 // pred_check
        %p189 = pneg %p112
      $region26: #{discriminator_forward.1} parent=11 // pred_check_branch
        %191 = sbr.rel (%p189) target = $region28
      $region27: #{discriminator_forward.1} parent=11 // pred_region
        _
      $region28: #{discriminator_forward.1} parent=11 // pred_fallthru
        _
      // Predicated region
      $region29: #{discriminator_forward.1} parent=11 // pred_check
        %p192 = pneg %p133
      $region30: #{discriminator_forward.1} parent=11 // pred_check_branch
        %194 = sbr.rel (%p192) target = $region32
      $region31: #{discriminator_forward.1} parent=11 // pred_region
        _
      $region32: #{discriminator_forward.1} parent=11 // pred_fallthru
        _
    $region12: #{discriminator_forward.1} parent=5 // pred_fallthru
      _
    %p195 = scmp.lt.s32.totalorder %s11, 2
    // Predicated region
    $region33: #{discriminator_forward.1} parent=5 // pred_check
      %p196 = pneg %p195
    $region34: #{discriminator_forward.1} parent=5 // pred_check_branch
      %198 = sbr.rel (%p196) target = $region36
    $region35: #{discriminator_forward.1} parent=5 // pred_region
      _
    $region36: #{discriminator_forward.1} parent=5 // pred_fallthru
      _
    %p199 = scmp.le.s32.totalorder 1, %s11
    %p200 = scmp.lt.s32.totalorder %s11, 3
    %p201 = pnand %p199, %p200
    %p202 = pneg %p201
    // Predicated region
    $region37: #{discriminator_forward.1} parent=5 // pred_check
      _
    $region38: #{discriminator_forward.1} parent=5 // pred_check_branch
      %204 = sbr.rel (%p201) target = $region40
    $region39: #{discriminator_forward.1} parent=5 // pred_region
      %s205 = ssub.s32 %s11, 1
      %s206 = smul.u32 2, %s21
      %p207 = scmp.lt.s32.totalorder %s206, 1
      %s208 = scalar_select %p207, %s206, 1
      %s209 = smul.addr %s208, 4
      %s210 = scalar_lea.vmem %s0, %s209
      %p211 = pneg %p49
      %p212 = pneg %p46
      %p213 = pneg %p70
      %p214 = pneg %p67
      %p215 = pneg %p91
      %p216 = pneg %p88
      %p217 = pneg %p112
      %p218 = pneg %p109
      %p219 = pneg %p133
      %p220 = pneg %p130
      %p221 = pneg %p159
      %p222 = pneg %p156
      %s223 = smul.u32 2, %s21
      %p224 = scmp.lt.s32.totalorder %s223, 1
      %s225 = scalar_select %p224, %s223, 1
      %s226 = smul.addr %s225, 8
      %s227 = scalar_lea.vmem %s5, %s226
      %s228 = smul.u32 2, %s21
      %p229 = scmp.lt.s32.totalorder %s228, 1
      %s230 = scalar_select %p229, %s228, 1
      %s231 = smul.addr %s230, 4
      %s232 = scalar_lea.vmem %s0, %s231
      %s233 = smul.u32 2, %s21
      %s234 = smul.u32 2, %s21
      %p235 = scmp.lt.s32.totalorder %s234, 1
      %s236 = scalar_select %p235, %s234, 1
      %s237 = smul.addr %s236, 8
      %s238 = scalar_lea.vmem %s5, %s237
      %s239 = smul.u32 2, %s21
      %v241 = vld [vmem:[%s232] sm:$0xf]
      %v242 = vld [vmem:[%s232 + $0x4] sm:$0xf]
      %v243 = vld [vmem:[%s1] sm:$0xf]
      %v244 = vld [vmem:[%s1 + $0x4] sm:$0xf]
      %v245 = vld [vmem:[%s1 + $0x8] sm:$0xf]
      %v246 = vld [vmem:[%s1 + $0xc] sm:$0xf]
      %v249 = vunpack.c.l.b16 %v241
      %v250 = vunpack.c.l.b16 %v242
      %v251 = vpack.c.b16 %v250, %v249
      %v256 = vunpack.c.l.b16 %v243
      %v257 = vunpack.c.l.b16 %v244
      %v258 = vunpack.c.l.b16 %v245
      %v259 = vunpack.c.l.b16 %v246
      %v260 = vpack.c.b16 %v257, %v256
      %v261 = vpack.c.b16 %v259, %v258
      %vm264 = vcmask 261120
      %v266 = vsel %vm264, %v251, 0
      %268 = vmatpush.bf16.msra.mxu0 0
      %269 = vmatpush.bf16.msra.mxu0 0
      %270 = vmatpush.bf16.msra.mxu0 0
      %271 = vmatpush.bf16.msra.mxu0 0
      %272 = vmatpush.bf16.msra.mxu0 0
      %273 = vmatpush.bf16.msra.mxu0 0
      %274 = vmatpush.bf16.msra.mxu0 %v261
      %275 = vmatpush.bf16.msra.mxu0 %v260
      %276 = vmatmul.bf16.gmra.mxu0 %v266
      %v277 = vpop.f32.mrf.mxu0
      %v278 = vadd.f32 0.0, %v277
      %v279 = vpop.f32.mrf.mxu0
      %v280 = vadd.f32 0.0, %v279
      %281 = vdwg.mxu0
      %p282 = scmp.eq.s32.totalorder %s20, 0
      // Predicated region
      $region41: #{discriminator_forward.1} parent=39 // pred_check
        %p283 = pneg %p282
      $region42: #{discriminator_forward.1} parent=39 // pred_check_branch
        %285 = sbr.rel (%p283) target = $region44
      $region43: #{discriminator_forward.1} parent=39 // pred_region
        %p286 = scmp.eq.s32.totalorder %s21, 0
        // Predicated region
        $region45: #{discriminator_forward.1} parent=43 // pred_check
          %p287 = pneg %p286
        $region46: #{discriminator_forward.1} parent=43 // pred_check_branch
          %289 = sbr.rel (%p287) target = $region48
        $region47: #{discriminator_forward.1} parent=43 // pred_region
          %290 = vst [vmem:[#allocation2] sm:$0x1] 0.0
          %291 = vst [vmem:[#allocation3] sm:$0x1] 0.0
        $region48: #{discriminator_forward.1} parent=43 // pred_fallthru
          _
        %v292 = vld [vmem:[#allocation2] sm:$0x1]
        %v293 = vadd.f32 %v278, %v280
        %v294 = vrot.slane %v293, 4
        %v295 = vadd.f32 %v293, %v294
        %v296 = vrot.slane %v295, 2
        %v297 = vadd.f32 %v295, %v296
        %v298 = vrot.slane %v297, 1
        %v299 = vadd.f32 %v297, %v298
        %v300 = vadd.f32 %v292, %v299
        %301 = vst [vmem:[#allocation2] sm:$0x1] %v300
        %v302 = vld [vmem:[#allocation3] sm:$0x1]
        %v303 = vmul.f32 %v278, %v278
        %v304 = vmul.f32 %v280, %v280
        %v305 = vadd.f32 %v303, %v304
        %v306 = vrot.slane %v305, 4
        %v307 = vadd.f32 %v305, %v306
        %v308 = vrot.slane %v307, 2
        %v309 = vadd.f32 %v307, %v308
        %v310 = vrot.slane %v309, 1
        %v311 = vadd.f32 %v309, %v310
        %v312 = vadd.f32 %v302, %v311
        %313 = vst [vmem:[#allocation3] sm:$0x1] %v312
        // Predicated region
        $region49: #{discriminator_forward.1} parent=43 // pred_check
          %p314 = pneg %p286
        $region50: #{discriminator_forward.1} parent=43 // pred_check_branch
          %316 = sbr.rel (%p314) target = $region52
        $region51: #{discriminator_forward.1} parent=43 // pred_region
          %v317 = vld [vmem:[#allocation2] sm:$0x1]
          %v318 = vmul.f32 %v317, 0.1
          %v319 = vld [vmem:[#allocation3] sm:$0x1]
          %v320 = vmul.f32 %v319, 0.1
          %v321 = vmul.f32 %v318, %v318
          %v322 = vsub.f32 %v320, %v321
          %v323 = vmax.f32 %v322, 0.0
          %v324 = vld [vmem:[%s2] sm:$0x1]
          %v325 = vadd.f32 %v323, 1e-05
          %v326 = vrsqrt.pop %v325
          %v327 = vmul.f32 %v326, %v325
          %v328 = vmul.f32 %v327, %v326
          %v329 = vmul.f32 0.5, %v328
          %v330 = vsub.f32 1.5, %v329
          %v331 = vmul.f32 %v326, %v330
          %vm332 = vweird.f32 %v325
          %vm333 = vweird.f32 %v326
          %vm334 = vmor %vm332, %vm333
          %v335 = vsel %vm334, %v326, %v331
          %v336 = vmul.f32 %v324, %v335
          %337 = vst [vmem:[#allocation4] sm:$0x1] %v336
          %v338 = vld [vmem:[%s3] sm:$0x1]
          %v339 = vmul.f32 %v318, %v336
          %v340 = vsub.f32 %v338, %v339
          %341 = vst [vmem:[#allocation5] sm:$0x1] %v340
        $region52: #{discriminator_forward.1} parent=43 // pred_fallthru
          _
        %vm342 = vcmask 7168
        %343 = vst.msk [vmem:[%s238] sm:$0xff] %vm342, 0.0
        %344 = vst.msk [vmem:[%s238 + $0x8] sm:$0xff] %vm342, 0.0
      $region44: #{discriminator_forward.1} parent=39 // pred_fallthru
        _
      %p345 = scmp.eq.s32.totalorder %s20, 1
      // Predicated region
      $region53: #{discriminator_forward.1} parent=39 // pred_check
        %p346 = pneg %p345
      $region54: #{discriminator_forward.1} parent=39 // pred_check_branch
        %348 = sbr.rel (%p346) target = $region56
      $region55: #{discriminator_forward.1} parent=39 // pred_region
        %v349 = vld [vmem:[#allocation4] sm:$0x1]
        %v351 = vperm.slane %v349, 0
        %v353 = vmul.f32 %v278, %v351
        %v354 = vmul.f32 %v280, %v351
        %v355 = vld [vmem:[#allocation5] sm:$0x1]
        %v357 = vperm.slane %v355, 0
        %v359 = vadd.f32 %v353, %v357
        %v360 = vadd.f32 %v354, %v357
        %v361 = vxor.u32 %v359, 2147483648
        %v362 = vxor.u32 %v360, 2147483648
        %v363 = vmul.f32 %v361, 1.442695
        %v364 = vpow.pop %v363
        %v365 = vmul.f32 %v362, 1.442695
        %v366 = vpow.pop %v365
        %v367 = vadd.f32 %v364, 1.0
        %v368 = vadd.f32 %v366, 1.0
        %v369 = vrcp.pop %v367
        %v370 = vmul.f32 %v367, %v369
        %v371 = vsub.f32 1.0, %v370
        %v372 = vmul.f32 %v369, %v371
        %v373 = vadd.f32 %v369, %v372
        %vm374 = vweird.f32 %v367
        %vm375 = vweird.f32 %v369
        %vm376 = vmor %vm374, %vm375
        %v377 = vsel %vm376, %v369, %v373
        %v378 = vand.u32 2147483647, %v367
        %vm379 = vcmp.eq.f32.partialorder %v378, 8.507059e+37
        %v380 = vand.u32 %v367, 2147483648
        %v381 = vor.u32 1.1754944e-38, %v380
        %v382 = vsel %vm379, %v381, %v377
        %v383 = vmul.f32 1.0, %v382
        %v384 = vrcp.pop %v368
        %v385 = vmul.f32 %v368, %v384
        %v386 = vsub.f32 1.0, %v385
        %v387 = vmul.f32 %v384, %v386
        %v388 = vadd.f32 %v384, %v387
        %vm389 = vweird.f32 %v368
        %vm390 = vweird.f32 %v384
        %vm391 = vmor %vm389, %vm390
        %v392 = vsel %vm391, %v384, %v388
        %v393 = vand.u32 2147483647, %v368
        %vm394 = vcmp.eq.f32.partialorder %v393, 8.507059e+37
        %v395 = vand.u32 %v368, 2147483648
        %v396 = vor.u32 1.1754944e-38, %v395
        %v397 = vsel %vm394, %v396, %v392
        %v398 = vmul.f32 1.0, %v397
        %v399 = vmul.f32 %v359, %v383
        %v400 = vmul.f32 %v360, %v398
        %v401 = vld [vmem:[%s4] sm:$0x1]
        %v403 = vperm.slane %v401, 0
        %v405 = vmul.f32 %v399, %v403
        %v406 = vmul.f32 %v400, %v403
        %407 = vadd.xlane.f32.xlu0 %v405
        %v408 = vpop.xlane.xlu0 %407
        %409 = vadd.xlane.f32.xlu0 %v406
        %v410 = vpop.xlane.xlu0 %409
        %vm411 = vcmask 7168
        %412 = vst.msk [vmem:[%s238] sm:$0xff] %vm411, %v408
        %413 = vst.msk [vmem:[%s238 + $0x8] sm:$0xff] %vm411, %v410
      $region56: #{discriminator_forward.1} parent=39 // pred_fallthru
        _
      %s414 = smul.u32 2, %s21
      %p415 = scmp.lt.s32.totalorder %s414, 1
      %s416 = scalar_select %p415, %s414, 1
      %s417 = smul.addr %s416, 8
      %s418 = scalar_lea.vmem %s5, %s417
      // Predicated region
      $region57: #{discriminator_forward.1} parent=39 // pred_check
        %p419 = pneg %p156
      $region58: #{discriminator_forward.1} parent=39 // pred_check_branch
        %421 = sbr.rel (%p419) target = $region60
      $region59: #{discriminator_forward.1} parent=39 // pred_region
        %s422 = smul.u32 2, %s21
      $region60: #{discriminator_forward.1} parent=39 // pred_fallthru
        _
      // Predicated region
      $region61: #{discriminator_forward.1} parent=39 // pred_check
        %p423 = pneg %p156
      $region62: #{discriminator_forward.1} parent=39 // pred_check_branch
        %425 = sbr.rel (%p423) target = $region64
      $region63: #{discriminator_forward.1} parent=39 // pred_region
        %s426 = smul.u32 2, %s21
        %p427 = scmp.lt.s32.totalorder %s426, 1
        %s428 = scalar_select %p427, %s426, 1
        %s429 = smul.addr %s428, 8
        %s430 = scalar_lea.vmem %s5, %s429
      $region64: #{discriminator_forward.1} parent=39 // pred_fallthru
        _
    $region40: #{discriminator_forward.1} parent=5 // pred_fallthru
      _
    %p431 = scmp.le.s32.totalorder 2, %s11
    // Predicated region
    $region65: #{discriminator_forward.1} parent=5 // pred_check
      %p432 = pneg %p431
    $region66: #{discriminator_forward.1} parent=5 // pred_check_branch
      %434 = sbr.rel (%p432) target = $region68
    $region67: #{discriminator_forward.1} parent=5 // pred_region
      %s435 = ssub.s32 %s11, 2
    $region68: #{discriminator_forward.1} parent=5 // pred_fallthru
      _
  $region6: #{discriminator_forward.1} parent=0 // loop_footer
    %s15 = sadd.s32 1, %s11
  $region7: #{discriminator_forward.1} parent=0 // loop_footer_branch
    %10 = sbr.rel target = $region3
  $region8: #{discriminator_forward.1} parent=0 // loop_exit
    _

</llo_original>
